<compile_context>
chip_gen: v6e
topology: v6e:2x2x1
jax: 0.10.0
libtpu: 0.0.40
codegen_flags: <defaults>
</compile_context>

<pallas_src>
import functools

import jax
import jax.numpy as jnp
from jax.experimental import pallas as pl
from jax.experimental.pallas import tpu as pltpu


def _fused_nand_kernel(x_ref, w_ref, q_ref, o_ref, *, tn):
    # x_ref: (TB, Din)   f32  batch tile (resident across column tiles)
    # w_ref: (Din, 2*TN) bf16 packed one-hot columns: [A-cols | B-cols] of tile j
    # q_ref: (2, TN)     f32  row 0: qa, row 1: (1 - 2*qa)
    # o_ref: (TB, TN)    f32  output tile, already in concatenated head layout
    w = w_ref[...].astype(jnp.float32)                 # exact: values are 0/1
    y = jnp.dot(x_ref[...], w, preferred_element_type=jnp.float32)  # (TB, 2*TN)
    a = y[:, :tn]
    b = y[:, tn:]
    and_out = a * b
    q = q_ref[...]
    qa = q[0:1, :]                                     # broadcasts over batch
    c = q[1:2, :]                                      # 1 - 2*qa (hoisted)
    o_ref[...] = qa + c * and_out


def sparse_btnn_nand_multihead(x, mask_a, mask_b, qa):
    """x: (B, Din) f32; mask_a/mask_b: (H, Dout, Din) one-hot rows; qa: (H, 1, Dout)."""
    n_heads, d_out, d_in = mask_a.shape
    batch = x.shape[0]
    n_half = n_heads * d_out                       # width of concatenated output

    # Output-column tile: 128-multiples when the problem allows, else full width.
    tn = 128 if (n_half % 128 == 0 and n_half >= 128) else n_half
    nj = n_half // tn
    # Batch tile: full batch unless it is large and evenly tileable.
    tb = 256 if (batch % 256 == 0 and batch > 256) else batch
    nb = batch // tb

    # Pre-transpose masks to (Din, H*Dout) with column h*Dout + j = MaskX_h[j, :],
    # then interleave A/B at column-tile granularity so each grid step reads one
    # contiguous (Din, 2*TN) slab: [A-tile_j | B-tile_j].
    wa = jnp.transpose(mask_a, (2, 0, 1)).reshape(d_in, n_half)
    wb = jnp.transpose(mask_b, (2, 0, 1)).reshape(d_in, n_half)
    w = jnp.stack(
        [wa.reshape(d_in, nj, tn), wb.reshape(d_in, nj, tn)], axis=2
    ).reshape(d_in, 2 * n_half).astype(jnp.bfloat16)   # (Din, 2*H*Dout), bf16

    qa_flat = qa.reshape(n_half).astype(jnp.float32)
    q_packed = jnp.stack([qa_flat, 1.0 - 2.0 * qa_flat], axis=0)  # (2, H*Dout)

    kernel = functools.partial(_fused_nand_kernel, tn=tn)

    flops = 2 * batch * d_in * (2 * n_half) + 4 * batch * n_half
    bytes_accessed = (x.size * 4 + w.size * 2 + q_packed.size * 4
                      + batch * n_half * 4)

    out = pl.pallas_call(
        kernel,
        out_shape=jax.ShapeDtypeStruct((batch, n_half), jnp.float32),
        grid=(nb, nj),
        in_specs=[
            pl.BlockSpec((tb, d_in), lambda i, j: (i, 0)),
            pl.BlockSpec((d_in, 2 * tn), lambda i, j: (0, j)),
            pl.BlockSpec((2, tn), lambda i, j: (0, j)),
        ],
        out_specs=pl.BlockSpec((tb, tn), lambda i, j: (i, j)),
        compiler_params=pltpu.CompilerParams(
            dimension_semantics=("parallel", "parallel")),
        cost_estimate=pl.CostEstimate(
            flops=flops, transcendentals=0, bytes_accessed=bytes_accessed),
    )(x, w, q_packed)
    return out                                        # (batch, H*Dout), final layout


# ----------------------- parameter construction (glue) -----------------------

def xavier_uniform(key, shape):
    fan_out, fan_in = shape
    limit = (6.0 / (fan_in + fan_out)) ** 0.5
    return jax.random.uniform(key, shape, jnp.float32, -limit, limit)


def selector_forward_mask(key, weight, temperature=1.0):
    """Forward value of weighted_random(weight): one-hot row mask sampled from
    softmax(weight / T, dim=1). (Straight-through residual cancels forward.)"""
    idx = jax.random.categorical(key, weight / temperature, axis=1)
    return jax.nn.one_hot(idx, weight.shape[1], dtype=jnp.float32)


def build_params(key, input_dim, output_dim, n_heads):
    mask_a, mask_b, qa = [], [], []
    for _ in range(n_heads):
        k_wa, k_wb, k_sa, k_sb, k_not, key = jax.random.split(key, 6)
        wa = xavier_uniform(k_wa, (output_dim, input_dim))
        wb = xavier_uniform(k_wb, (output_dim, input_dim))
        mask_a.append(selector_forward_mask(k_sa, wa))
        mask_b.append(selector_forward_mask(k_sb, wb))
        not_param = jax.random.normal(k_not, (output_dim,), jnp.float32)
        qa.append((not_param > 0).astype(jnp.float32))  # straight-through fwd value
    mask_a = jnp.stack(mask_a)                       # (H, Dout, Din)
    mask_b = jnp.stack(mask_b)                       # (H, Dout, Din)
    qa = jnp.stack(qa).reshape(n_heads, 1, output_dim)
    return mask_a, mask_b, qa


def reference_forward(x, mask_a, mask_b, qa):
    """Pure-JAX reference matching the PyTorch module's forward."""
    heads = []
    for h in range(mask_a.shape[0]):
        a = x @ mask_a[h].T
        b = x @ mask_b[h].T
        ab = a * b
        q = qa[h, 0]
        heads.append(q + ab - 2.0 * q * ab)
    return jnp.concatenate(heads, axis=-1)


if __name__ == "__main__":
    input_dim, output_dim, n_heads, batch = 32, 16, 4, 8

    key = jax.random.PRNGKey(0)
    k_x, k_params = jax.random.split(key)
    x = jax.random.uniform(k_x, (batch, input_dim), jnp.float32)
    mask_a, mask_b, qa = build_params(k_params, input_dim, output_dim, n_heads)

    out = sparse_btnn_nand_multihead(x, mask_a, mask_b, qa)
    out = jax.block_until_ready(out)

    ref = reference_forward(x, mask_a, mask_b, qa)
    assert out.shape == (batch, n_heads * output_dim)
    assert jnp.allclose(out, ref, atol=1e-5, rtol=1e-5)

    print("KERNEL_OK")
</pallas_src>

<mosaic_0001>
module attributes {stable_mosaic.version = 11 : i64} {
  func.func @_fused_nand_kernel(%arg0: i32, %arg1: i32, %arg2: memref<8x32xf32, #tpu.memory_space<vmem>>, %arg3: memref<32x128xbf16, #tpu.memory_space<vmem>>, %arg4: memref<2x64xf32, #tpu.memory_space<vmem>>, %arg5: memref<8x64xf32, #tpu.memory_space<vmem>>) attributes {dimension_semantics = [#tpu.dimension_semantics<parallel>, #tpu.dimension_semantics<parallel>], iteration_bounds = array<i64: 1, 1>, scalar_prefetch = 0 : i64, scratch_operands = 0 : i64, tpu.core_type = #tpu.core_type<tc>, window_params = [{transform_indices = @transform_0, window_bounds = array<i64: 8, 32>}, {transform_indices = @transform_1, window_bounds = array<i64: 32, 128>}, {transform_indices = @transform_2, window_bounds = array<i64: 2, 64>}, {transform_indices = @transform_3, window_bounds = array<i64: 8, 64>}]} {
    %c0 = arith.constant 0 : index
    %c0_0 = arith.constant 0 : index
    %0 = vector.load %arg3[%c0, %c0_0] : memref<32x128xbf16, #tpu.memory_space<vmem>>, vector<32x128xbf16>
    %1 = arith.extf %0 : vector<32x128xbf16> to vector<32x128xf32>
    %c0_1 = arith.constant 0 : index
    %c0_2 = arith.constant 0 : index
    %2 = vector.load %arg2[%c0_1, %c0_2] : memref<8x32xf32, #tpu.memory_space<vmem>>, vector<8x32xf32>
    %cst = arith.constant dense<0.000000e+00> : vector<8x128xf32>
    %3 = tpu.matmul %2, %1, %cst {dimension_numbers = #tpu.dot_dimension_numbers<[1], [0], [0], [1], [0, 0, 1, 1], [], []>} : vector<8x32xf32>, vector<32x128xf32>, vector<8x128xf32> -> vector<8x128xf32>
    %4 = vector.extract_strided_slice %3 {offsets = [0, 0], sizes = [8, 64], strides = [1, 1]} : vector<8x128xf32> to vector<8x64xf32>
    %5 = vector.extract_strided_slice %3 {offsets = [0, 64], sizes = [8, 64], strides = [1, 1]} : vector<8x128xf32> to vector<8x64xf32>
    %6 = arith.mulf %4, %5 : vector<8x64xf32>
    %c0_3 = arith.constant 0 : index
    %c0_4 = arith.constant 0 : index
    %7 = vector.load %arg4[%c0_3, %c0_4] : memref<2x64xf32, #tpu.memory_space<vmem>>, vector<2x64xf32>
    %8 = vector.extract_strided_slice %7 {offsets = [0, 0], sizes = [1, 64], strides = [1, 1]} : vector<2x64xf32> to vector<1x64xf32>
    %9 = vector.extract_strided_slice %7 {offsets = [1, 0], sizes = [1, 64], strides = [1, 1]} : vector<2x64xf32> to vector<1x64xf32>
    %10 = vector.broadcast %9 : vector<1x64xf32> to vector<8x64xf32>
    %11 = arith.mulf %10, %6 : vector<8x64xf32>
    %12 = vector.broadcast %8 : vector<1x64xf32> to vector<8x64xf32>
    %13 = arith.addf %12, %11 : vector<8x64xf32>
    %c0_5 = arith.constant 0 : index
    %c0_6 = arith.constant 0 : index
    %14 = vector.load %arg5[%c0_5, %c0_6] : memref<8x64xf32, #tpu.memory_space<vmem>>, vector<8x64xf32>
    tpu.vector_store %arg5[%c0_5, %c0_6], %13 {strides = array<i32>} : memref<8x64xf32, #tpu.memory_space<vmem>>, vector<8x64xf32>,
    return
  }
  func.func @transform_0(%arg0: i32, %arg1: i32) -> (i32, i32) {
    %c0_i32 = arith.constant 0 : i32
    %c0_i32_0 = arith.constant 0 : i32
    return %arg0, %c0_i32 : i32, i32
  }
  func.func @transform_1(%arg0: i32, %arg1: i32) -> (i32, i32) {
    %c0_i32 = arith.constant 0 : i32
    %c0_i32_0 = arith.constant 0 : i32
    return %c0_i32, %arg1 : i32, i32
  }
  func.func @transform_2(%arg0: i32, %arg1: i32) -> (i32, i32) {
    %c0_i32 = arith.constant 0 : i32
    %c0_i32_0 = arith.constant 0 : i32
    return %c0_i32, %arg1 : i32, i32
  }
  func.func @transform_3(%arg0: i32, %arg1: i32) -> (i32, i32) {
    %c0_i32 = arith.constant 0 : i32
    return %arg0, %arg1 : i32, i32
  }
}

</mosaic_0001>

<llo_original>
// kernel: tpu_custom_call.1
$region0: #{tpu_custom_call.1}
  #allocation0 [shape = 'u32[]', space=smem, size = 0x4, offset = 0x4, fixed_abs, tag = 'smem constant byte address 0x4 - core index']
  #allocation1 [shape = 'u32[144,128]{1,0:T(1,128)}', space=vmem, size = 0x12000, scoped, tag = 'internal scratch']
  %s0 = inlined_call_operand.hbm [shape: f32[8,32], index: 0, kind: input, shape index: {}]
  %s1 = inlined_call_operand.hbm [shape: bf16[32,128], index: 1, kind: input, shape index: {}]
  %s2 = inlined_call_operand.vmem [shape: f32[2,64], index: 2, kind: input, shape index: {}]
  %s3 = inlined_call_operand.hbm [shape: f32[8,64], index: 3, kind: output, shape index: {}]
  %s4 = sld [smem:[#allocation0]]
  $region30: #{tpu_custom_call.1} parent=0
    _
  %s6 = ssub.s32 1, %s4
  %s7 = scalar_select 0, %s6, %s4
  $region1: #{tpu_custom_call.1} parent=0
    #allocation2 [shape = 'u8[4096]{0}', space=vmem, size = 0x1000, scoped, tag = 'input window, operand 0, single buffered']
    #allocation3 [shape = 's32[1]{0}', space=sflag, size = 0x4, scoped, tag = 'scoped memory for tpu_custom_call.1']
    #allocation4 [shape = 's32[1]{0}', space=sflag, size = 0x4, scoped, tag = 'scoped memory for tpu_custom_call.1']
    #allocation5 [shape = 'u8[8192]{0}', space=vmem, size = 0x2000, scoped, tag = 'input window, operand 1, single buffered']
    #allocation6 [shape = 's32[1]{0}', space=sflag, size = 0x4, scoped, tag = 'scoped memory for tpu_custom_call.1']
    #allocation7 [shape = 'u8[4096]{0}', space=vmem, size = 0x1000, scoped, tag = 'output window, operand 0, single buffered']
    %8 = vsyncpa [#allocation3], 0
    %9 = vsyncpa [#allocation6], 0
    %10 = vsyncpa [#allocation4], 0
    // Predicated region
    $region2: #{tpu_custom_call.1} parent=1 // pred_check
      _
    $region3: #{tpu_custom_call.1} parent=1 // pred_check_branch
      %12 = sbr.rel (0) target = $region5
    $region4: #{tpu_custom_call.1} parent=1 // pred_region
      %s14 = ssub.s32 128, 128
      %15 = vsyncadd [#allocation3], %s14
      %s17 = sshll.u32 [#allocation2], 4
      %s18 = int_to_ptr.vmem [resolvable:$true] %s17
      %20 = dma.hbm_to_vmem [thread:$0]  %s0, 128, %s18, [#allocation3]
    $region5: #{tpu_custom_call.1} parent=1 // pred_fallthru
      _
    // Predicated region
    $region6: #{tpu_custom_call.1} parent=1 // pred_check
      _
    $region7: #{tpu_custom_call.1} parent=1 // pred_check_branch
      %22 = sbr.rel (0) target = $region9
    $region8: #{tpu_custom_call.1} parent=1 // pred_region
      %s24 = ssub.s32 256, 256
      %25 = vsyncadd [#allocation6], %s24
      %s26 = sshll.u32 [#allocation5], 4
      %s27 = int_to_ptr.vmem [resolvable:$true] %s26
      %32 = dma.hbm_to_vmem [thread:$0]  %s1, 256, %s27, [#allocation6], 64, 64, 4
    $region9: #{tpu_custom_call.1} parent=1 // pred_fallthru
      _
    // Predicated region
    $region10: #{tpu_custom_call.1} parent=1 // pred_check
      _
    $region11: #{tpu_custom_call.1} parent=1 // pred_check_branch
      %34 = sbr.rel (0) target = $region13
    $region12: #{tpu_custom_call.1} parent=1 // pred_region
      _
    $region13: #{tpu_custom_call.1} parent=1 // pred_fallthru
      _
    // Predicated region
    $region14: #{tpu_custom_call.1} parent=1 // pred_check
      _
    $region15: #{tpu_custom_call.1} parent=1 // pred_check_branch
      %36 = sbr.rel (0) target = $region17
    $region16: #{tpu_custom_call.1} parent=1 // pred_region
      %37 = dma.done [#allocation3], 128
    $region17: #{tpu_custom_call.1} parent=1 // pred_fallthru
      _
    // Predicated region
    $region18: #{tpu_custom_call.1} parent=1 // pred_check
      _
    $region19: #{tpu_custom_call.1} parent=1 // pred_check_branch
      %39 = sbr.rel (0) target = $region21
    $region20: #{tpu_custom_call.1} parent=1 // pred_region
      %40 = dma.done [#allocation6], 256
    $region21: #{tpu_custom_call.1} parent=1 // pred_fallthru
      _
    %v41 = vld [vmem:[#allocation5] sm:$0xf]
    %v42 = vld [vmem:[#allocation5 + $0x4] sm:$0xf]
    %v43 = vld [vmem:[#allocation5 + $0x8] sm:$0xf]
    %v44 = vld [vmem:[#allocation5 + $0xc] sm:$0xf]
    %v45 = vunpack.c.l.bf16 %v41
    %v46 = vunpack.c.l.bf16 %v42
    %v47 = vunpack.c.l.bf16 %v43
    %v48 = vunpack.c.l.bf16 %v44
    %v49 = vld [vmem:[#allocation2] sm:$0xff]
    %vm50 = vcmask 261120
    %v52 = vsel %vm50, %v49, 0
    %54 = vmatprep.subr.mxu0 0.0
    %55 = vmatpush1.msra.mxu0 0.0
    %56 = vmatprep.subr.mxu0 0.0
    %57 = vmatpush1.msra.mxu0 0.0
    %58 = vmatprep.subr.mxu0 0.0
    %59 = vmatpush1.msra.mxu0 0.0
    %60 = vmatprep.subr.mxu0 0.0
    %61 = vmatpush1.msra.mxu0 0.0
    %62 = vmatprep.subr.mxu0 0.0
    %63 = vmatpush1.msra.mxu0 0.0
    %64 = vmatprep.subr.mxu0 0.0
    %65 = vmatpush1.msra.mxu0 0.0
    %66 = vmatprep.subr.mxu0 0.0
    %67 = vmatpush1.msra.mxu0 0.0
    %68 = vmatprep.subr.mxu0 0.0
    %69 = vmatpush1.msra.mxu0 0.0
    %70 = vmatprep.subr.mxu0 0.0
    %71 = vmatpush1.msra.mxu0 0.0
    %72 = vmatprep.subr.mxu0 0.0
    %73 = vmatpush1.msra.mxu0 0.0
    %74 = vmatprep.subr.mxu0 0.0
    %75 = vmatpush1.msra.mxu0 0.0
    %76 = vmatprep.subr.mxu0 0.0
    %77 = vmatpush1.msra.mxu0 0.0
    %78 = vmatprep.subr.mxu0 0.0
    %79 = vmatpush1.msra.mxu0 %v48
    %80 = vmatprep.subr.mxu0 0.0
    %81 = vmatpush1.msra.mxu0 %v47
    %82 = vmatprep.subr.mxu0 0.0
    %83 = vmatpush1.msra.mxu0 %v46
    %84 = vmatprep.subr.mxu0 0.0
    %85 = vmatpush1.msra.mxu0 %v45
    %86 = vmatprep.subr.mxu0 0.0
    %87 = vmatpush2.msra.mxu0 0.0
    %88 = vmatprep.subr.mxu0 0.0
    %89 = vmatpush2.msra.mxu0 0.0
    %90 = vmatprep.subr.mxu0 0.0
    %91 = vmatpush2.msra.mxu0 0.0
    %92 = vmatprep.subr.mxu0 0.0
    %93 = vmatpush2.msra.mxu0 0.0
    %94 = vmatprep.subr.mxu0 0.0
    %95 = vmatpush2.msra.mxu0 0.0
    %96 = vmatprep.subr.mxu0 0.0
    %97 = vmatpush2.msra.mxu0 0.0
    %98 = vmatprep.subr.mxu0 0.0
    %99 = vmatpush2.msra.mxu0 0.0
    %100 = vmatprep.subr.mxu0 0.0
    %101 = vmatpush2.msra.mxu0 0.0
    %102 = vmatprep.subr.mxu0 0.0
    %103 = vmatpush2.msra.mxu0 0.0
    %104 = vmatprep.subr.mxu0 0.0
    %105 = vmatpush2.msra.mxu0 0.0
    %106 = vmatprep.subr.mxu0 0.0
    %107 = vmatpush2.msra.mxu0 0.0
    %108 = vmatprep.subr.mxu0 0.0
    %109 = vmatpush2.msra.mxu0 0.0
    %110 = vmatprep.subr.mxu0 0.0
    %111 = vmatpush2.msra.mxu0 0.0
    %112 = vmatprep.subr.mxu0 0.0
    %113 = vmatpush2.msra.mxu0 0.0
    %114 = vmatprep.subr.mxu0 0.0
    %115 = vmatpush2.msra.mxu0 0.0
    %116 = vmatprep.subr.mxu0 0.0
    %117 = vmatpush2.msra.mxu0 0.0
    %118 = vmatprep.mubr.f32.mxu0 0.0
    %119 = vmatmul.mubr.f32.gmra.mxu0 %v52
    %v120 = vpop.f32.mrf.mxu0
    %v121 = vadd.f32 0.0, %v120
    %v122 = vpop.f32.mrf.mxu0
    %123 = vdwg.mxu0
    %125 = vrot.lane.b32.xlu0 %v121, 64
    %v126 = vpop.permute.xlu0 %125
    %v128 = vmul.f32 %v121, %v126
    %v129 = vld [vmem:[%s2] sm:$0x3]
    %v130 = vlaneseq
    %v131 = vshrl.u32 %v130, 7
    %v132 = vsub.s32 1, %v131
    %v133 = vrot.slane %v129, %v132
    %v134 = vmul.f32 %v133, %v128
    %v135 = vlaneseq
    %v136 = vshrl.u32 %v135, 7
    %v137 = vsub.s32 0, %v136
    %v138 = vrot.slane %v129, %v137
    %v139 = vadd.f32 %v138, %v134
    %vm140 = vcmask 523264
    %141 = vst.msk [vmem:[#allocation7] sm:$0xff] %vm140, %v139
    // Predicated region
    $region22: #{tpu_custom_call.1} parent=1 // pred_check
      _
    $region23: #{tpu_custom_call.1} parent=1 // pred_check_branch
      %143 = sbr.rel (0) target = $region25
    $region24: #{tpu_custom_call.1} parent=1 // pred_region
      %s145 = ssub.s32 128, 128
      %146 = vsyncadd [#allocation4], %s145
      %s148 = sshll.u32 [#allocation7], 4
      %s149 = int_to_ptr.vmem [resolvable:$true] %s148
      %151 = dma.vmem_to_hbm [thread:$0]  %s149, 128, %s3, [#allocation4]
    $region25: #{tpu_custom_call.1} parent=1 // pred_fallthru
      _
    // Predicated region
    $region26: #{tpu_custom_call.1} parent=1 // pred_check
      _
    $region27: #{tpu_custom_call.1} parent=1 // pred_check_branch
      %153 = sbr.rel (0) target = $region29
    $region28: #{tpu_custom_call.1} parent=1 // pred_region
      %154 = dma.done [#allocation4], 128
    $region29: #{tpu_custom_call.1} parent=1 // pred_fallthru
      _
    %155 = vsyncpa [#allocation3], 1
    %156 = vsyncpa [#allocation6], 1
    %157 = vsyncpa [#allocation4], 1

</llo_original>
